<compile_context>
chip_gen: v6e
topology: v6e:2x2x1
jax: 0.10.0
libtpu: 0.0.40
codegen_flags: <defaults>
</compile_context>

<pallas_src>
import functools
import math

import jax
import jax.numpy as jnp
from jax import lax
from jax.experimental import pallas as pl
from jax.experimental.pallas import tpu as pltpu

_HALF_LOG_2PI = 0.5 * math.log(2.0 * math.pi)
_VMEM_INPUT_BUDGET = 24 * 1024 * 1024   # target double-buffered input footprint


def _round_up(x: int, m: int) -> int:
    return ((x + m - 1) // m) * m


def _actor_critic_loss_kernel(means_ref, vars_ref, actions_ref, td_ref, etd_ref,
                              out_ref, *, tb: int, true_b: int, log2pi_term: float):
    i = pl.program_id(0)

    # Upcast to f32 inside the kernel (inputs may arrive as bf16).
    means = means_ref[...].astype(jnp.float32)       # (TB, A)
    var = vars_ref[...].astype(jnp.float32)          # (TB, A)
    actions = actions_ref[...].astype(jnp.float32)   # (TB, A)
    td = td_ref[...].astype(jnp.float32)             # (TB, 1)
    etd = etd_ref[...].astype(jnp.float32)           # (TB, 1)

    # sum_a log N(actions | means, sqrt(var)) =
    #   -0.5 * sum_a [ (x-mu)^2 / var + log(var) ] - A * 0.5 * log(2*pi)
    diff = actions - means
    inv_var = pl.reciprocal(var, approx=False)        # exact; keeps tolerance tight
    core = diff * diff * inv_var + jnp.log(var)        # (TB, A)
    row_core = jnp.sum(core, axis=-1, keepdims=True)   # (TB, 1) lane reduce (XLU)

    advantage = etd - td                               # (TB, 1)

    # Tail mask: rows past the true batch (out-of-bounds block region holds
    # undefined data) must contribute 0 to BOTH terms.  jnp.where is a select,
    # so NaN/Inf from garbage rows cannot leak through.
    rows = i * tb + lax.broadcasted_iota(jnp.int32, row_core.shape, 0)
    valid = rows < true_b

    actor_rows = jnp.where(valid,
                           advantage * (-0.5 * row_core - log2pi_term),
                           0.0)

    # Huber (delta = 1.0) on td vs expected_td; |td - etd| == |advantage|.
    ad = jnp.abs(advantage)
    huber = jnp.where(ad < 1.0, 0.5 * advantage * advantage, ad - 0.5)
    huber_rows = jnp.where(valid, huber, 0.0)

    partial_actor = jnp.sum(actor_rows)   # scalar partial for this tile
    partial_huber = jnp.sum(huber_rows)   # scalar partial for this tile

    # Lane-dense (1, 8, 128) per-tile output block: lane 0 = actor partial,
    # lane 1 = huber partial (wrapper reads [:, 0, 0] / [:, 0, 1]).
    lane = lax.broadcasted_iota(jnp.int32, (1, 8, 128), 2)
    out_ref[...] = jnp.where(lane == 0, partial_actor,
                             jnp.where(lane == 1, partial_huber, 0.0))


def _pick_tile(B: int, A: int, itemsize: int):
    """Tile rows from the VMEM budget; alignment from the dtype packing."""
    align = max(8, 32 // itemsize)                 # 8 f32, 16 bf16, 32 int8/fp8
    a_pad = _round_up(A, 128)
    # Per row, double-buffered: 3 x (tb, A) inputs + 2 x lane-padded (tb, 1).
    per_row = 2 * itemsize * (3 * a_pad + 2 * 128)
    tb = max(align, (_VMEM_INPUT_BUDGET // per_row) // align * align)
    if B >= align:
        # Keep the block no larger than the array in the batch dim (last block
        # may still be a partial edge block, handled by in-kernel masking).
        tb = min(tb, (B // align) * align)
    return tb, align


def actor_critic_loss(means, variances, actions, td_val, expected_td):
    """Pallas wrapper: parallel grid over batch tiles, per-tile partial sums."""
    B, A = means.shape
    td_val = jnp.reshape(td_val, (B, 1))
    expected_td = jnp.reshape(expected_td, (B, 1))

    itemsize = jnp.dtype(means.dtype).itemsize
    tb, align = _pick_tile(B, A, itemsize)

    # Only degenerate tiny batches (B < sublane alignment) get padded rows;
    # padded rows are masked in-kernel so their values are irrelevant.
    rows = B
    if B < align:
        pad = align - B
        means = jnp.pad(means, ((0, pad), (0, 0)))
        actions = jnp.pad(actions, ((0, pad), (0, 0)))
        variances = jnp.pad(variances, ((0, pad), (0, 0)), constant_values=1)
        td_val = jnp.pad(td_val, ((0, pad), (0, 0)))
        expected_td = jnp.pad(expected_td, ((0, pad), (0, 0)))
        rows = align

    num_tiles = pl.cdiv(rows, tb)

    kernel = functools.partial(
        _actor_critic_loss_kernel,
        tb=tb,
        true_b=B,
        log2pi_term=float(A) * _HALF_LOG_2PI,
    )

    grid_spec = pltpu.PrefetchScalarGridSpec(
        num_scalar_prefetch=0,
        grid=(num_tiles,),
        in_specs=[
            pl.BlockSpec((tb, A), lambda i: (i, 0)),
            pl.BlockSpec((tb, A), lambda i: (i, 0)),
            pl.BlockSpec((tb, A), lambda i: (i, 0)),
            pl.BlockSpec((tb, 1), lambda i: (i, 0)),
            pl.BlockSpec((tb, 1), lambda i: (i, 0)),
        ],
        out_specs=pl.BlockSpec((1, 8, 128), lambda i: (i, 0, 0)),
    )

    partials = pl.pallas_call(
        kernel,
        out_shape=jax.ShapeDtypeStruct((num_tiles, 8, 128), jnp.float32),
        grid_spec=grid_spec,
        compiler_params=pltpu.CompilerParams(
            dimension_semantics=("parallel",),
            vmem_limit_bytes=32 * 1024 * 1024,
        ),
    )(means, variances, actions, td_val, expected_td)

    loss_actor = jnp.sum(partials[:, 0, 0])
    loss_critic = jnp.sum(partials[:, 0, 1]) / B   # Huber 'mean' over true B
    return loss_actor + loss_critic


def _reference(means, variances, actions, td_val, expected_td):
    """Pure-JAX reference mirroring the PyTorch forward (f32)."""
    means = means.astype(jnp.float32)
    variances = variances.astype(jnp.float32)
    actions = actions.astype(jnp.float32)
    td_val = td_val.astype(jnp.float32)
    expected_td = expected_td.astype(jnp.float32)

    advantage = expected_td - td_val
    diff = actions - means
    log_prob = (-0.5 * (diff * diff) / variances
                - 0.5 * jnp.log(variances)
                - _HALF_LOG_2PI)
    loss_actor = jnp.sum(log_prob * advantage)
    d = td_val - expected_td
    ad = jnp.abs(d)
    huber = jnp.where(ad < 1.0, 0.5 * d * d, ad - 0.5)
    loss_critic = jnp.mean(huber)
    return loss_actor + loss_critic


if __name__ == "__main__":
    # B not a multiple of the chosen tile -> exercises the in-kernel tail mask
    # and a multi-tile parallel grid.
    B, A = 20, 128

    key = jax.random.PRNGKey(0)
    k1, k2, k3, k4, k5 = jax.random.split(key, 5)

    means = jax.random.normal(k1, (B, A), dtype=jnp.float32)
    variances = jax.random.uniform(k2, (B, A), dtype=jnp.float32,
                                   minval=0.5, maxval=1.5)  # strictly positive
    actions = jax.random.normal(k3, (B, A), dtype=jnp.float32)
    td_val = jax.random.normal(k4, (B, 1), dtype=jnp.float32)
    expected_td = jax.random.normal(k5, (B, 1), dtype=jnp.float32)

    loss = actor_critic_loss(means, variances, actions, td_val, expected_td)
    loss = jax.block_until_ready(loss)

    ref = _reference(means, variances, actions, td_val, expected_td)
    # Tolerance accounts for f32 summation-order differences (tiled reduce).
    assert jnp.allclose(loss, ref, rtol=1e-4, atol=1e-3), (loss, ref)

    print("KERNEL_OK")
</pallas_src>

<mosaic_0001>
module attributes {stable_mosaic.version = 11 : i64} {
  func.func @_actor_critic_loss_kernel(%arg0: i32, %arg1: memref<16x128xf32, #tpu.memory_space<vmem>>, %arg2: memref<16x128xf32, #tpu.memory_space<vmem>>, %arg3: memref<16x128xf32, #tpu.memory_space<vmem>>, %arg4: memref<16x1xf32, #tpu.memory_space<vmem>>, %arg5: memref<16x1xf32, #tpu.memory_space<vmem>>, %arg6: memref<1x8x128xf32, #tpu.memory_space<vmem>>) attributes {dimension_semantics = [#tpu.dimension_semantics<parallel>], iteration_bounds = array<i64: 2>, scalar_prefetch = 0 : i64, scratch_operands = 0 : i64, tpu.core_type = #tpu.core_type<tc>, window_params = [{transform_indices = @transform_0, window_bounds = array<i64: 16, 128>}, {transform_indices = @transform_1, window_bounds = array<i64: 16, 128>}, {transform_indices = @transform_2, window_bounds = array<i64: 16, 128>}, {transform_indices = @transform_3, window_bounds = array<i64: 16, 1>}, {transform_indices = @transform_4, window_bounds = array<i64: 16, 1>}, {transform_indices = @transform_5, window_bounds = array<i64: 1, 8, 128>}]} {
    %c0 = arith.constant 0 : index
    %c0_0 = arith.constant 0 : index
    %0 = vector.load %arg1[%c0, %c0_0] : memref<16x128xf32, #tpu.memory_space<vmem>>, vector<16x128xf32>
    %c0_1 = arith.constant 0 : index
    %c0_2 = arith.constant 0 : index
    %1 = vector.load %arg2[%c0_1, %c0_2] : memref<16x128xf32, #tpu.memory_space<vmem>>, vector<16x128xf32>
    %c0_3 = arith.constant 0 : index
    %c0_4 = arith.constant 0 : index
    %2 = vector.load %arg3[%c0_3, %c0_4] : memref<16x128xf32, #tpu.memory_space<vmem>>, vector<16x128xf32>
    %c0_5 = arith.constant 0 : index
    %c0_6 = arith.constant 0 : index
    %3 = vector.load %arg4[%c0_5, %c0_6] : memref<16x1xf32, #tpu.memory_space<vmem>>, vector<16x1xf32>
    %c0_7 = arith.constant 0 : index
    %c0_8 = arith.constant 0 : index
    %4 = vector.load %arg5[%c0_7, %c0_8] : memref<16x1xf32, #tpu.memory_space<vmem>>, vector<16x1xf32>
    %5 = arith.subf %2, %0 : vector<16x128xf32>
    %6 = tpu.reciprocal %1 : vector<16x128xf32> -> vector<16x128xf32>
    %7 = arith.mulf %5, %5 : vector<16x128xf32>
    %8 = arith.mulf %7, %6 : vector<16x128xf32>
    %9 = math.log %1 : vector<16x128xf32>
    %10 = arith.addf %8, %9 : vector<16x128xf32>
    %cst = arith.constant dense<0.000000e+00> : vector<16xf32>
    %11 = vector.multi_reduction <add>, %10, %cst [1] : vector<16x128xf32> to vector<16xf32>
    %12 = vector.shape_cast %11 : vector<16xf32> to vector<16x1xf32>
    %13 = arith.subf %4, %3 : vector<16x1xf32>
    %c16_i32 = arith.constant 16 : i32
    %14 = arith.muli %arg0, %c16_i32 : i32
    %15 = tpu.iota {dimensions = array<i32: 0>} : vector<16x1xi32>
    %16 = vector.broadcast %14 : i32 to vector<16x1xi32>
    %17 = arith.addi %16, %15 : vector<16x1xi32>
    %c20_i32 = arith.constant 20 : i32
    %18 = vector.broadcast %c20_i32 : i32 to vector<16x1xi32>
    %19 = arith.cmpi slt, %17, %18 : vector<16x1xi32>
    %cst_9 = arith.constant -5.000000e-01 : f32
    %20 = vector.broadcast %cst_9 : f32 to vector<16x1xf32>
    %21 = arith.mulf %20, %12 : vector<16x1xf32>
    %cst_10 = arith.constant 117.62413 : f32
    %22 = vector.broadcast %cst_10 : f32 to vector<16x1xf32>
    %23 = arith.subf %21, %22 : vector<16x1xf32>
    %24 = arith.mulf %13, %23 : vector<16x1xf32>
    %cst_11 = arith.constant 0.000000e+00 : f32
    %25 = vector.broadcast %cst_11 : f32 to vector<16x1xf32>
    %26 = arith.select %19, %24, %25 : vector<16x1xi1>, vector<16x1xf32>
    %27 = math.absf %13 : vector<16x1xf32>
    %cst_12 = arith.constant 1.000000e+00 : f32
    %28 = vector.broadcast %cst_12 : f32 to vector<16x1xf32>
    %29 = arith.cmpf olt, %27, %28 : vector<16x1xf32>
    %cst_13 = arith.constant 5.000000e-01 : f32
    %30 = vector.broadcast %cst_13 : f32 to vector<16x1xf32>
    %31 = arith.mulf %30, %13 : vector<16x1xf32>
    %32 = arith.mulf %31, %13 : vector<16x1xf32>
    %cst_14 = arith.constant 5.000000e-01 : f32
    %33 = vector.broadcast %cst_14 : f32 to vector<16x1xf32>
    %34 = arith.subf %27, %33 : vector<16x1xf32>
    %35 = arith.select %29, %32, %34 : vector<16x1xi1>, vector<16x1xf32>
    %cst_15 = arith.constant 0.000000e+00 : f32
    %36 = vector.broadcast %cst_15 : f32 to vector<16x1xf32>
    %37 = arith.select %19, %35, %36 : vector<16x1xi1>, vector<16x1xf32>
    %38 = vector.shape_cast %26 : vector<16x1xf32> to vector<1x16x1xf32>
    %cst_16 = arith.constant dense<0.000000e+00> : vector<1xf32>
    %39 = vector.multi_reduction <add>, %38, %cst_16 [1, 2] : vector<1x16x1xf32> to vector<1xf32>
    %40 = vector.shape_cast %39 : vector<1xf32> to vector<1x1x1xf32>
    %41 = vector.extract %40[0, 0, 0] : f32 from vector<1x1x1xf32>
    %42 = vector.shape_cast %37 : vector<16x1xf32> to vector<1x16x1xf32>
    %cst_17 = arith.constant dense<0.000000e+00> : vector<1xf32>
    %43 = vector.multi_reduction <add>, %42, %cst_17 [1, 2] : vector<1x16x1xf32> to vector<1xf32>
    %44 = vector.shape_cast %43 : vector<1xf32> to vector<1x1x1xf32>
    %45 = vector.extract %44[0, 0, 0] : f32 from vector<1x1x1xf32>
    %46 = tpu.iota {dimensions = array<i32: 2>} : vector<1x8x128xi32>
    %c0_i32 = arith.constant 0 : i32
    %47 = vector.broadcast %c0_i32 : i32 to vector<1x8x128xi32>
    %48 = arith.cmpi eq, %46, %47 : vector<1x8x128xi32>
    %c1_i32 = arith.constant 1 : i32
    %49 = vector.broadcast %c1_i32 : i32 to vector<1x8x128xi32>
    %50 = arith.cmpi eq, %46, %49 : vector<1x8x128xi32>
    %cst_18 = arith.constant 0.000000e+00 : f32
    %51 = vector.broadcast %45 : f32 to vector<1x8x128xf32>
    %52 = vector.broadcast %cst_18 : f32 to vector<1x8x128xf32>
    %53 = arith.select %50, %51, %52 : vector<1x8x128xi1>, vector<1x8x128xf32>
    %54 = vector.broadcast %41 : f32 to vector<1x8x128xf32>
    %55 = arith.select %48, %54, %53 : vector<1x8x128xi1>, vector<1x8x128xf32>
    %c0_19 = arith.constant 0 : index
    %c0_20 = arith.constant 0 : index
    %c0_21 = arith.constant 0 : index
    %56 = vector.load %arg6[%c0_19, %c0_20, %c0_21] : memref<1x8x128xf32, #tpu.memory_space<vmem>>, vector<1x8x128xf32>
    tpu.vector_store %arg6[%c0_19, %c0_20, %c0_21], %55 {strides = array<i32>} : memref<1x8x128xf32, #tpu.memory_space<vmem>>, vector<1x8x128xf32>,
    return
  }
  func.func @transform_0(%arg0: i32) -> (i32, i32) {
    %c0_i32 = arith.constant 0 : i32
    %c0_i32_0 = arith.constant 0 : i32
    return %arg0, %c0_i32 : i32, i32
  }
  func.func @transform_1(%arg0: i32) -> (i32, i32) {
    %c0_i32 = arith.constant 0 : i32
    %c0_i32_0 = arith.constant 0 : i32
    return %arg0, %c0_i32 : i32, i32
  }
  func.func @transform_2(%arg0: i32) -> (i32, i32) {
    %c0_i32 = arith.constant 0 : i32
    %c0_i32_0 = arith.constant 0 : i32
    return %arg0, %c0_i32 : i32, i32
  }
  func.func @transform_3(%arg0: i32) -> (i32, i32) {
    %c0_i32 = arith.constant 0 : i32
    %c0_i32_0 = arith.constant 0 : i32
    return %arg0, %c0_i32 : i32, i32
  }
  func.func @transform_4(%arg0: i32) -> (i32, i32) {
    %c0_i32 = arith.constant 0 : i32
    %c0_i32_0 = arith.constant 0 : i32
    return %arg0, %c0_i32 : i32, i32
  }
  func.func @transform_5(%arg0: i32) -> (i32, i32, i32) {
    %c0_i32 = arith.constant 0 : i32
    %c0_i32_0 = arith.constant 0 : i32
    %c0_i32_1 = arith.constant 0 : i32
    return %arg0, %c0_i32, %c0_i32_0 : i32, i32, i32
  }
}

</mosaic_0001>

<llo_original>
// kernel: tpu_custom_call.1
$region0: #{tpu_custom_call.1}
  #allocation0 [shape = 'u32[]', space=smem, size = 0x4, offset = 0x4, fixed_abs, tag = 'smem constant byte address 0x4 - core index']
  #allocation1 [shape = 'u32[144,128]{1,0:T(1,128)}', space=vmem, size = 0x12000, scoped, tag = 'internal scratch']
  %s0 = inlined_call_operand.vmem [shape: f32[20,128], index: 0, kind: input, shape index: {}]
  %s1 = inlined_call_operand.vmem [shape: f32[20,128], index: 1, kind: input, shape index: {}]
  %s2 = inlined_call_operand.hbm [shape: f32[20,128], index: 2, kind: input, shape index: {}]
  %s3 = inlined_call_operand.vmem [shape: f32[20,1], index: 3, kind: input, shape index: {}]
  %s4 = inlined_call_operand.vmem [shape: f32[20,1], index: 4, kind: input, shape index: {}]
  %s5 = inlined_call_operand.hbm [shape: f32[2,8,128], index: 5, kind: output, shape index: {}]
  %s6 = sld [smem:[#allocation0]]
  $region57: #{tpu_custom_call.1} parent=0
    _
  %s8 = ssub.s32 1, %s6
  %s9 = scalar_select 0, %s8, %s6
  $region1: #{tpu_custom_call.1} parent=0
    #allocation2 [shape = 'u8[16384]{0}', space=vmem, size = 0x4000, scoped, tag = 'input window, operand 2']
    #allocation3 [shape = 's32[2]{0}', space=sflag, size = 0x8, scoped, tag = 'scoped memory for tpu_custom_call.1']
    #allocation4 [shape = 's32[2]{0}', space=sflag, size = 0x8, scoped, tag = 'scoped memory for tpu_custom_call.1']
    #allocation5 [shape = 'u8[8192]{0}', space=vmem, size = 0x2000, scoped, tag = 'output window, operand 0']
    %10 = vsyncpa [#allocation3], 0
    %s11 = scalar_lea.sflag [#allocation3], 1
    %12 = vsyncpa %s11, 0
    %13 = vsyncpa [#allocation4], 0
    %s14 = scalar_lea.sflag [#allocation4], 1
    %15 = vsyncpa %s14, 0
    loop: start=0, step=1, limit=4
    $region2: #{tpu_custom_call.1} parent=1 // loop_pre_header
      _
    $region3: #{tpu_custom_call.1} parent=1 // loop_header
      %s17 = sphi 0, %s21
      %p18 = scmp.ge.s32.totalorder %s17, 4
      %s27 = sphi 0, %s29
      %s30 = sphi 0, %s27
      %s31 = sphi 0, %s30
      %s47 = sphi 0, %s31
      %s53 = sphi 0, %s55
      %s56 = sphi 0, %s53
      %s57 = sphi 0, %s56
      %s73 = sphi 0, %s57
      %s79 = sphi 0, %s81
      %s82 = sphi 0, %s79
      %s83 = sphi 0, %s82
      %s99 = sphi 0, %s83
      %s105 = sphi 0, %s107
      %s108 = sphi 0, %s105
      %s109 = sphi 0, %s108
      %s125 = sphi 0, %s109
      %s131 = sphi 0, %s133
      %s134 = sphi 0, %s131
      %s135 = sphi 0, %s134
      %s151 = sphi 0, %s135
      %s157 = sphi 0, %s159
      %s160 = sphi 0, %s157
      %s161 = sphi 0, %s160
      %s177 = sphi 0, %s161
    $region4: #{tpu_custom_call.1} parent=1 // loop_header_branch
      %20 = sbr.rel (%p18) target = $region8
    $region5: #{tpu_custom_call.1} parent=1 // loop_body
      %s22 = ssub.s32 %s17, 1
      %s23 = ssub.s32 %s17, 2
      %s24 = sadd.s32 %s17, 1
      %s25 = ssub.s32 %s17, %s24
      %p26 = scmp.eq.s32.totalorder %s25, 0
      %s28 = sadd.s32 %s27, 1
      %s29 = scalar_select %p26, %s27, %s28
      %p32 = pneg %p26
      %p33 = scmp.eq.s32.totalorder %s17, 1
      %p34 = por %p32, %p33
      %p35 = scmp.ne.s32.totalorder %s27, %s30
      %p36 = scmp.eq.s32.totalorder %s17, 0
      %p37 = por %p35, %p36
      %p38 = scmp.ne.s32.totalorder %s27, %s30
      %p39 = scmp.eq.s32.totalorder %s22, 1
      %p40 = por %p38, %p39
      %p41 = scmp.ne.s32.totalorder %s30, %s31
      %p42 = scmp.eq.s32.totalorder %s22, 0
      %p43 = por %p41, %p42
      %p44 = scmp.ne.s32.totalorder %s30, %s31
      %p45 = scmp.eq.s32.totalorder %s23, 1
      %p46 = por %p44, %p45
      %p48 = scmp.ne.s32.totalorder %s31, %s47
      %p49 = scmp.eq.s32.totalorder %s23, 0
      %p50 = por %p48, %p49
      %s51 = ssub.s32 %s17, %s24
      %p52 = scmp.eq.s32.totalorder %s51, 0
      %s54 = sadd.s32 %s53, 1
      %s55 = scalar_select %p52, %s53, %s54
      %p58 = pneg %p52
      %p59 = scmp.eq.s32.totalorder %s17, 1
      %p60 = por %p58, %p59
      %p61 = scmp.ne.s32.totalorder %s53, %s56
      %p62 = scmp.eq.s32.totalorder %s17, 0
      %p63 = por %p61, %p62
      %p64 = scmp.ne.s32.totalorder %s53, %s56
      %p65 = scmp.eq.s32.totalorder %s22, 1
      %p66 = por %p64, %p65
      %p67 = scmp.ne.s32.totalorder %s56, %s57
      %p68 = scmp.eq.s32.totalorder %s22, 0
      %p69 = por %p67, %p68
      %p70 = scmp.ne.s32.totalorder %s56, %s57
      %p71 = scmp.eq.s32.totalorder %s23, 1
      %p72 = por %p70, %p71
      %p74 = scmp.ne.s32.totalorder %s57, %s73
      %p75 = scmp.eq.s32.totalorder %s23, 0
      %p76 = por %p74, %p75
      %s77 = ssub.s32 %s17, %s24
      %p78 = scmp.eq.s32.totalorder %s77, 0
      %s80 = sadd.s32 %s79, 1
      %s81 = scalar_select %p78, %s79, %s80
      %p84 = pneg %p78
      %p85 = scmp.eq.s32.totalorder %s17, 1
      %p86 = por %p84, %p85
      %p87 = scmp.ne.s32.totalorder %s79, %s82
      %p88 = scmp.eq.s32.totalorder %s17, 0
      %p89 = por %p87, %p88
      %p90 = scmp.ne.s32.totalorder %s79, %s82
      %p91 = scmp.eq.s32.totalorder %s22, 1
      %p92 = por %p90, %p91
      %p93 = scmp.ne.s32.totalorder %s82, %s83
      %p94 = scmp.eq.s32.totalorder %s22, 0
      %p95 = por %p93, %p94
      %p96 = scmp.ne.s32.totalorder %s82, %s83
      %p97 = scmp.eq.s32.totalorder %s23, 1
      %p98 = por %p96, %p97
      %p100 = scmp.ne.s32.totalorder %s83, %s99
      %p101 = scmp.eq.s32.totalorder %s23, 0
      %p102 = por %p100, %p101
      %s103 = ssub.s32 %s17, %s24
      %p104 = scmp.eq.s32.totalorder %s103, 0
      %s106 = sadd.s32 %s105, 1
      %s107 = scalar_select %p104, %s105, %s106
      %p110 = pneg %p104
      %p111 = scmp.eq.s32.totalorder %s17, 1
      %p112 = por %p110, %p111
      %p113 = scmp.ne.s32.totalorder %s105, %s108
      %p114 = scmp.eq.s32.totalorder %s17, 0
      %p115 = por %p113, %p114
      %p116 = scmp.ne.s32.totalorder %s105, %s108
      %p117 = scmp.eq.s32.totalorder %s22, 1
      %p118 = por %p116, %p117
      %p119 = scmp.ne.s32.totalorder %s108, %s109
      %p120 = scmp.eq.s32.totalorder %s22, 0
      %p121 = por %p119, %p120
      %p122 = scmp.ne.s32.totalorder %s108, %s109
      %p123 = scmp.eq.s32.totalorder %s23, 1
      %p124 = por %p122, %p123
      %p126 = scmp.ne.s32.totalorder %s109, %s125
      %p127 = scmp.eq.s32.totalorder %s23, 0
      %p128 = por %p126, %p127
      %s129 = ssub.s32 %s17, %s24
      %p130 = scmp.eq.s32.totalorder %s129, 0
      %s132 = sadd.s32 %s131, 1
      %s133 = scalar_select %p130, %s131, %s132
      %p136 = pneg %p130
      %p137 = scmp.eq.s32.totalorder %s17, 1
      %p138 = por %p136, %p137
      %p139 = scmp.ne.s32.totalorder %s131, %s134
      %p140 = scmp.eq.s32.totalorder %s17, 0
      %p141 = por %p139, %p140
      %p142 = scmp.ne.s32.totalorder %s131, %s134
      %p143 = scmp.eq.s32.totalorder %s22, 1
      %p144 = por %p142, %p143
      %p145 = scmp.ne.s32.totalorder %s134, %s135
      %p146 = scmp.eq.s32.totalorder %s22, 0
      %p147 = por %p145, %p146
      %p148 = scmp.ne.s32.totalorder %s134, %s135
      %p149 = scmp.eq.s32.totalorder %s23, 1
      %p150 = por %p148, %p149
      %p152 = scmp.ne.s32.totalorder %s135, %s151
      %p153 = scmp.eq.s32.totalorder %s23, 0
      %p154 = por %p152, %p153
      %s155 = ssub.s32 %s17, %s24
      %p156 = scmp.eq.s32.totalorder %s155, 0
      %s158 = sadd.s32 %s157, 1
      %s159 = scalar_select %p156, %s157, %s158
      %p162 = pneg %p156
      %p163 = scmp.eq.s32.totalorder %s17, 1
      %p164 = por %p162, %p163
      %p165 = scmp.ne.s32.totalorder %s157, %s160
      %p166 = scmp.eq.s32.totalorder %s17, 0
      %p167 = por %p165, %p166
      %p168 = scmp.ne.s32.totalorder %s157, %s160
      %p169 = scmp.eq.s32.totalorder %s22, 1
      %p170 = por %p168, %p169
      %p171 = scmp.ne.s32.totalorder %s160, %s161
      %p172 = scmp.eq.s32.totalorder %s22, 0
      %p173 = por %p171, %p172
      %p174 = scmp.ne.s32.totalorder %s160, %s161
      %p175 = scmp.eq.s32.totalorder %s23, 1
      %p176 = por %p174, %p175
      %p178 = scmp.ne.s32.totalorder %s161, %s177
      %p179 = scmp.eq.s32.totalorder %s23, 0
      %p180 = por %p178, %p179
      %p181 = scmp.le.s32.totalorder 1, %s17
      %p182 = scmp.lt.s32.totalorder %s17, 3
      %p183 = pnand %p181, %p182
      %p184 = pneg %p183
      // Predicated region
      $region9: #{tpu_custom_call.1} parent=5 // pred_check
        _
      $region10: #{tpu_custom_call.1} parent=5 // pred_check_branch
        %186 = sbr.rel (%p183) target = $region12
      $region11: #{tpu_custom_call.1} parent=5 // pred_region
        %s187 = ssub.s32 %s17, 1
      $region12: #{tpu_custom_call.1} parent=5 // pred_fallthru
        _
      %p188 = scmp.lt.s32.totalorder %s17, 2
      // Predicated region
      $region13: #{tpu_custom_call.1} parent=5 // pred_check
        %p189 = pneg %p188
      $region14: #{tpu_custom_call.1} parent=5 // pred_check_branch
        %191 = sbr.rel (%p189) target = $region16
      $region15: #{tpu_custom_call.1} parent=5 // pred_region
        // Predicated region
        $region17: #{tpu_custom_call.1} parent=15 // pred_check
          %p192 = pneg %p37
        $region18: #{tpu_custom_call.1} parent=15 // pred_check_branch
          %194 = sbr.rel (%p192) target = $region20
        $region19: #{tpu_custom_call.1} parent=15 // pred_region
          %s195 = smul.u32 2, %s17
          %s196 = ssub.s32 3, %s195
          %p197 = scmp.lt.s32.totalorder %s196, 2
          %s198 = scalar_select %p197, %s196, 2
          %s199 = smul.u32 128, %s198
          %p200 = scmp.lt.s32.totalorder %s195, 2
          %s201 = scalar_select %p200, %s195, 2
          %s202 = smul.addr %s201, 8
          %s203 = scalar_lea.vmem %s0, %s202
          %s204 = smul.u32 2, %s17
          %s205 = ssub.s32 3, %s204
          %p206 = scmp.lt.s32.totalorder %s205, 2
          %s207 = scalar_select %p206, %s205, 2
          %s208 = smul.u32 128, %s207
        $region20: #{tpu_custom_call.1} parent=15 // pred_fallthru
          _
        // Predicated region
        $region21: #{tpu_custom_call.1} parent=15 // pred_check
          %p209 = pneg %p63
        $region22: #{tpu_custom_call.1} parent=15 // pred_check_branch
          %211 = sbr.rel (%p209) target = $region24
        $region23: #{tpu_custom_call.1} parent=15 // pred_region
          %s212 = smul.u32 2, %s17
          %s213 = ssub.s32 3, %s212
          %p214 = scmp.lt.s32.totalorder %s213, 2
          %s215 = scalar_select %p214, %s213, 2
          %s216 = smul.u32 128, %s215
          %p217 = scmp.lt.s32.totalorder %s212, 2
          %s218 = scalar_select %p217, %s212, 2
          %s219 = smul.addr %s218, 8
          %s220 = scalar_lea.vmem %s1, %s219
          %s221 = smul.u32 2, %s17
          %s222 = ssub.s32 3, %s221
          %p223 = scmp.lt.s32.totalorder %s222, 2
          %s224 = scalar_select %p223, %s222, 2
          %s225 = smul.u32 128, %s224
        $region24: #{tpu_custom_call.1} parent=15 // pred_fallthru
          _
        // Predicated region
        $region25: #{tpu_custom_call.1} parent=15 // pred_check
          %p226 = pneg %p89
        $region26: #{tpu_custom_call.1} parent=15 // pred_check_branch
          %228 = sbr.rel (%p226) target = $region28
        $region27: #{tpu_custom_call.1} parent=15 // pred_region
          %s229 = sand.u32 %s79, 1
          %s230 = scalar_lea.sflag [#allocation3], %s229
          %s231 = sand.u32 %s79, 1
          %s232 = smul.addr %s231, 16
          %s233 = scalar_lea.vmem [#allocation2], %s232
          %s234 = smul.u32 2, %s17
          %s235 = ssub.s32 3, %s234
          %p236 = scmp.lt.s32.totalorder %s235, 2
          %s237 = scalar_select %p236, %s235, 2
          %s238 = smul.u32 128, %s237
          %s240 = ssub.s32 256, %s238
          %241 = vsyncadd %s230, %s240
          %p242 = scmp.ne.s32.totalorder 0, %s238
          %s243 = smul.addr %s234, 128
          %s244 = scalar_lea.hbm %s2, %s243
          %s245 = smul.u32 8, %s237
          %s246 = sshll.u32 %s233, 4
          %s247 = int_to_ptr.vmem [resolvable:$true] %s246
          %s248 = sshll.u32 %s245, 4
          %252 = dma.hbm_to_vmem [thread:$0]  (%p242), %s244, %s248, %s247, %s230, 128, 128, 8
        $region28: #{tpu_custom_call.1} parent=15 // pred_fallthru
          _
        // Predicated region
        $region29: #{tpu_custom_call.1} parent=15 // pred_check
          %p253 = pneg %p115
        $region30: #{tpu_custom_call.1} parent=15 // pred_check_branch
          %255 = sbr.rel (%p253) target = $region32
        $region31: #{tpu_custom_call.1} parent=15 // pred_region
          %s256 = smul.u32 2, %s17
          %s257 = ssub.s32 3, %s256
          %p258 = scmp.lt.s32.totalorder %s257, 2
          %s259 = scalar_select %p258, %s257, 2
          %s260 = smul.u32 128, %s259
          %p261 = scmp.lt.s32.totalorder %s256, 2
          %s262 = scalar_select %p261, %s256, 2
          %s263 = smul.addr %s262, 8
          %s264 = scalar_lea.vmem %s3, %s263
          %s265 = smul.u32 2, %s17
          %s266 = ssub.s32 3, %s265
          %p267 = scmp.lt.s32.totalorder %s266, 2
          %s268 = scalar_select %p267, %s266, 2
          %s269 = smul.u32 128, %s268
        $region32: #{tpu_custom_call.1} parent=15 // pred_fallthru
          _
        // Predicated region
        $region33: #{tpu_custom_call.1} parent=15 // pred_check
          %p270 = pneg %p141
        $region34: #{tpu_custom_call.1} parent=15 // pred_check_branch
          %272 = sbr.rel (%p270) target = $region36
        $region35: #{tpu_custom_call.1} parent=15 // pred_region
          %s273 = smul.u32 2, %s17
          %s274 = ssub.s32 3, %s273
          %p275 = scmp.lt.s32.totalorder %s274, 2
          %s276 = scalar_select %p275, %s274, 2
          %s277 = smul.u32 128, %s276
          %p278 = scmp.lt.s32.totalorder %s273, 2
          %s279 = scalar_select %p278, %s273, 2
          %s280 = smul.addr %s279, 8
          %s281 = scalar_lea.vmem %s4, %s280
          %s282 = smul.u32 2, %s17
          %s283 = ssub.s32 3, %s282
          %p284 = scmp.lt.s32.totalorder %s283, 2
          %s285 = scalar_select %p284, %s283, 2
          %s286 = smul.u32 128, %s285
        $region36: #{tpu_custom_call.1} parent=15 // pred_fallthru
          _
      $region16: #{tpu_custom_call.1} parent=5 // pred_fallthru
        _
      %p287 = scmp.le.s32.totalorder 1, %s17
      %p288 = scmp.lt.s32.totalorder %s17, 3
      %p289 = pnand %p287, %p288
      %p290 = pneg %p289
      // Predicated region
      $region37: #{tpu_custom_call.1} parent=5 // pred_check
        _
      $region38: #{tpu_custom_call.1} parent=5 // pred_check_branch
        %292 = sbr.rel (%p289) target = $region40
      $region39: #{tpu_custom_call.1} parent=5 // pred_region
        %s293 = ssub.s32 %s17, 1
        %s294 = sand.u32 %s82, 1
        %s295 = scalar_lea.sflag [#allocation3], %s294
        %s296 = sand.u32 %s82, 1
        %s297 = smul.addr %s296, 16
        %s298 = scalar_lea.vmem [#allocation2], %s297
        // Predicated region
        $region41: #{tpu_custom_call.1} parent=39 // pred_check
          %p299 = pneg %p95
        $region42: #{tpu_custom_call.1} parent=39 // pred_check_branch
          %301 = sbr.rel (%p299) target = $region44
        $region43: #{tpu_custom_call.1} parent=39 // pred_region
          %302 = dma.done %s295, 256
        $region44: #{tpu_custom_call.1} parent=39 // pred_fallthru
          _
        %s303 = smul.u32 2, %s22
        %s304 = ssub.s32 3, %s303
        %p305 = scmp.lt.s32.totalorder %s304, 2
        %s306 = scalar_select %p305, %s304, 2
        %s307 = smul.u32 128, %s306
        %p308 = scmp.lt.s32.totalorder %s303, 2
        %s309 = scalar_select %p308, %s303, 2
        %s310 = smul.addr %s309, 8
        %s311 = scalar_lea.vmem %s0, %s310
        %p312 = pneg %p43
        %p313 = pneg %p40
        %s314 = smul.u32 2, %s22
        %s315 = ssub.s32 3, %s314
        %p316 = scmp.lt.s32.totalorder %s315, 2
        %s317 = scalar_select %p316, %s315, 2
        %s318 = smul.u32 128, %s317
        %p319 = scmp.lt.s32.totalorder %s314, 2
        %s320 = scalar_select %p319, %s314, 2
        %s321 = smul.addr %s320, 8
        %s322 = scalar_lea.vmem %s1, %s321
        %p323 = pneg %p69
        %p324 = pneg %p66
        %s325 = sand.u32 %s82, 1
        %s326 = scalar_lea.sflag [#allocation3], %s325
        %s327 = sand.u32 %s82, 1
        %s328 = smul.addr %s327, 16
        %s329 = scalar_lea.vmem [#allocation2], %s328
        %p330 = pneg %p95
        %p331 = pneg %p92
        %s332 = smul.u32 2, %s22
        %s333 = ssub.s32 3, %s332
        %p334 = scmp.lt.s32.totalorder %s333, 2
        %s335 = scalar_select %p334, %s333, 2
        %s336 = smul.u32 128, %s335
        %p337 = scmp.lt.s32.totalorder %s332, 2
        %s338 = scalar_select %p337, %s332, 2
        %s339 = smul.addr %s338, 8
        %s340 = scalar_lea.vmem %s3, %s339
        %p341 = pneg %p121
        %p342 = pneg %p118
        %s343 = smul.u32 2, %s22
        %s344 = ssub.s32 3, %s343
        %p345 = scmp.lt.s32.totalorder %s344, 2
        %s346 = scalar_select %p345, %s344, 2
        %s347 = smul.u32 128, %s346
        %p348 = scmp.lt.s32.totalorder %s343, 2
        %s349 = scalar_select %p348, %s343, 2
        %s350 = smul.addr %s349, 8
        %s351 = scalar_lea.vmem %s4, %s350
        %p352 = pneg %p147
        %p353 = pneg %p144
        %p354 = pneg %p173
        %p355 = pneg %p170
        %s356 = sand.u32 %s160, 1
        %s357 = scalar_lea.sflag [#allocation4], %s356
        %s358 = sand.u32 %s160, 1
        %s359 = smul.addr %s358, 8
        %s360 = scalar_lea.vmem [#allocation5], %s359
        %s361 = smul.u32 2, %s22
        %s362 = ssub.s32 3, %s361
        %p363 = scmp.lt.s32.totalorder %s362, 2
        %s364 = scalar_select %p363, %s362, 2
        %s365 = smul.u32 128, %s364
        %p366 = scmp.lt.s32.totalorder %s361, 2
        %s367 = scalar_select %p366, %s361, 2
        %s368 = smul.addr %s367, 8
        %s369 = scalar_lea.vmem %s0, %s368
        %s370 = smul.u32 2, %s22
        %s371 = ssub.s32 3, %s370
        %p372 = scmp.lt.s32.totalorder %s371, 2
        %s373 = scalar_select %p372, %s371, 2
        %s374 = smul.u32 128, %s373
        %s375 = smul.u32 2, %s22
        %s376 = ssub.s32 3, %s375
        %p377 = scmp.lt.s32.totalorder %s376, 2
        %s378 = scalar_select %p377, %s376, 2
        %s379 = smul.u32 128, %s378
        %p380 = scmp.lt.s32.totalorder %s375, 2
        %s381 = scalar_select %p380, %s375, 2
        %s382 = smul.addr %s381, 8
        %s383 = scalar_lea.vmem %s1, %s382
        %s384 = smul.u32 2, %s22
        %s385 = ssub.s32 3, %s384
        %p386 = scmp.lt.s32.totalorder %s385, 2
        %s387 = scalar_select %p386, %s385, 2
        %s388 = smul.u32 128, %s387
        %s389 = smul.u32 2, %s22
        %s390 = ssub.s32 3, %s389
        %p391 = scmp.lt.s32.totalorder %s390, 2
        %s392 = scalar_select %p391, %s390, 2
        %s393 = smul.u32 128, %s392
        %s394 = smul.u32 2, %s22
        %s395 = ssub.s32 3, %s394
        %p396 = scmp.lt.s32.totalorder %s395, 2
        %s397 = scalar_select %p396, %s395, 2
        %s398 = smul.u32 128, %s397
        %p399 = scmp.lt.s32.totalorder %s394, 2
        %s400 = scalar_select %p399, %s394, 2
        %s401 = smul.addr %s400, 8
        %s402 = scalar_lea.vmem %s3, %s401
        %s403 = smul.u32 2, %s22
        %s404 = ssub.s32 3, %s403
        %p405 = scmp.lt.s32.totalorder %s404, 2
        %s406 = scalar_select %p405, %s404, 2
        %s407 = smul.u32 128, %s406
        %s408 = smul.u32 2, %s22
        %s409 = ssub.s32 3, %s408
        %p410 = scmp.lt.s32.totalorder %s409, 2
        %s411 = scalar_select %p410, %s409, 2
        %s412 = smul.u32 128, %s411
        %p413 = scmp.lt.s32.totalorder %s408, 2
        %s414 = scalar_select %p413, %s408, 2
        %s415 = smul.addr %s414, 8
        %s416 = scalar_lea.vmem %s4, %s415
        %s417 = smul.u32 2, %s22
        %s418 = ssub.s32 3, %s417
        %p419 = scmp.lt.s32.totalorder %s418, 2
        %s420 = scalar_select %p419, %s418, 2
        %s421 = smul.u32 128, %s420
        %v422 = vld [vmem:[%s369] sm:$0xff]
        %v423 = vld [vmem:[%s369 + $0x8] sm:$0xff]
        %v424 = vld [vmem:[%s383] sm:$0xff]
        %v425 = vld [vmem:[%s383 + $0x8] sm:$0xff]
        %v426 = vld [vmem:[%s298] sm:$0xff]
        %v427 = vld [vmem:[%s298 + $0x8] sm:$0xff]
        %v428 = vld [vmem:[%s402] sm:$0xff]
        %v429 = vld [vmem:[%s402 + $0x8] sm:$0xff]
        %v430 = vld [vmem:[%s416] sm:$0xff]
        %v431 = vld [vmem:[%s416 + $0x8] sm:$0xff]
        %v432 = vsub.f32 %v426, %v422
        %v433 = vsub.f32 %v427, %v423
        %v434 = vrcp.pop %v424
        %v435 = vrcp.pop %v425
        %v436 = vmul.f32 %v432, %v432
        %v437 = vmul.f32 %v433, %v433
        %v438 = vmul.f32 %v436, %v434
        %v439 = vmul.f32 %v437, %v435
        %v440 = vlog2.pop %v424
        %v441 = vmul.f32 %v440, 0.6931472
        %v442 = vlog2.pop %v425
        %v443 = vmul.f32 %v442, 0.6931472
        %v444 = vadd.f32 %v438, %v441
        %v445 = vadd.f32 %v439, %v443
        %446 = vadd.xlane.f32.xlu0 %v444
        %v447 = vpop.xlane.xlu0 %446
        %448 = vadd.xlane.f32.xlu0 %v445
        %v449 = vpop.xlane.xlu0 %448
        %v450 = vsub.f32 %v430, %v428
        %v451 = vsub.f32 %v431, %v429
        %s452 = smul.u32 %s22, 16
        %v453 = vlaneseq
        %v454 = vshrl.u32 %v453, 7
        %v455 = vadd.s32 %v454, 8
        %v456 = vstv %s452
        %v457 = vadd.s32 %v456, %v454
        %v458 = vadd.s32 %v456, %v455
        %vm459 = vcmp.lt.s32.totalorder %v457, 20
        %vm460 = vcmp.lt.s32.totalorder %v458, 20
        %v461 = vmul.f32 %v447, -0.5
        %v462 = vmul.f32 %v449, -0.5
        %v463 = vsub.f32 %v461, 117.62413
        %v464 = vsub.f32 %v462, 117.62413
        %v465 = vmul.f32 %v450, %v463
        %v466 = vmul.f32 %v451, %v464
        %v467 = vsel %vm459, %v465, 0.0
        %v468 = vsel %vm460, %v466, 0.0
        %v469 = vand.u32 2147483647, %v450
        %v470 = vand.u32 2147483647, %v451
        %vm471 = vcmp.lt.f32.partialorder %v469, 1.0
        %vm472 = vcmp.lt.f32.partialorder %v470, 1.0
        %v473 = vmul.f32 %v450, 0.5
        %v474 = vmul.f32 %v451, 0.5
        %v475 = vmul.f32 %v473, %v450
        %v476 = vmul.f32 %v474, %v451
        %v477 = vsub.f32 %v469, 0.5
        %v478 = vsub.f32 %v470, 0.5
        %v479 = vsel %vm471, %v475, %v477
        %v480 = vsel %vm472, %v476, %v478
        %v481 = vsel %vm459, %v479, 0.0
        %v482 = vsel %vm460, %v480, 0.0
        %vm483 = vcmask 7168
        %v484 = vsel %vm483, %v467, 0.0
        %v485 = vsel %vm483, %v468, 0.0
        %v486 = vadd.f32 %v484, %v485
        %487 = vadd.xlane.f32.xlu0 %v486
        %v488 = vpop.xlane.xlu0 %487
        %v489 = vrot.slane %v488, 4
        %v490 = vadd.f32 %v488, %v489
        %v491 = vrot.slane %v490, 2
        %v492 = vadd.f32 %v490, %v491
        %v493 = vrot.slane %v492, 1
        %v494 = vadd.f32 %v492, %v493
        %s495 = vtos %v494
        %v496 = vsel %vm483, %v481, 0.0
        %v497 = vsel %vm483, %v482, 0.0
        %v498 = vadd.f32 %v496, %v497
        %499 = vadd.xlane.f32.xlu0 %v498
        %v500 = vpop.xlane.xlu0 %499
        %v501 = vrot.slane %v500, 4
        %v502 = vadd.f32 %v500, %v501
        %v503 = vrot.slane %v502, 2
        %v504 = vadd.f32 %v502, %v503
        %v505 = vrot.slane %v504, 1
        %v506 = vadd.f32 %v504, %v505
        %s507 = vtos %v506
        %v508 = vlaneseq
        %v509 = vand.u32 %v508, 127
        %vm510 = vcmp.eq.s32.totalorder %v509, 0
        %vm511 = vcmp.eq.s32.totalorder %v509, 1
        %v512 = vstv %s507
        %v513 = vsel %vm511, %v512, 0.0
        %v514 = vstv %s495
        %v515 = vsel %vm510, %v514, %v513
        %516 = vst [vmem:[%s360] sm:$0xff] %v515
        %s517 = sand.u32 %s160, 1
        %s518 = scalar_lea.sflag [#allocation4], %s517
        %s519 = sand.u32 %s160, 1
        %s520 = smul.addr %s519, 8
        %s521 = scalar_lea.vmem [#allocation5], %s520
        // Predicated region
        $region45: #{tpu_custom_call.1} parent=39 // pred_check
          %p522 = pneg %p170
        $region46: #{tpu_custom_call.1} parent=39 // pred_check_branch
          %524 = sbr.rel (%p522) target = $region48
        $region47: #{tpu_custom_call.1} parent=39 // pred_region
          %s526 = ssub.s32 128, 128
          %527 = vsyncadd %s518, %s526
          %s528 = smul.addr %s22, 128
          %s529 = scalar_lea.hbm %s5, %s528
          %s531 = sshll.u32 %s521, 4
          %s532 = int_to_ptr.vmem [resolvable:$true] %s531
          %534 = dma.vmem_to_hbm [thread:$0]  %s532, 128, %s529, %s518
        $region48: #{tpu_custom_call.1} parent=39 // pred_fallthru
          _
      $region40: #{tpu_custom_call.1} parent=5 // pred_fallthru
        _
      %p535 = scmp.le.s32.totalorder 2, %s17
      // Predicated region
      $region49: #{tpu_custom_call.1} parent=5 // pred_check
        %p536 = pneg %p535
      $region50: #{tpu_custom_call.1} parent=5 // pred_check_branch
        %538 = sbr.rel (%p536) target = $region52
      $region51: #{tpu_custom_call.1} parent=5 // pred_region
        %s539 = ssub.s32 %s17, 2
        // Predicated region
        $region53: #{tpu_custom_call.1} parent=51 // pred_check
          %p540 = pneg %p176
        $region54: #{tpu_custom_call.1} parent=51 // pred_check_branch
          %542 = sbr.rel (%p540) target = $region56
        $region55: #{tpu_custom_call.1} parent=51 // pred_region
          %s543 = sand.u32 %s161, 1
          %s544 = scalar_lea.sflag [#allocation4], %s543
          %s545 = sand.u32 %s161, 1
          %s546 = smul.addr %s545, 8
          %s547 = scalar_lea.vmem [#allocation5], %s546
          %548 = dma.done %s544, 128
        $region56: #{tpu_custom_call.1} parent=51 // pred_fallthru
          _
      $region52: #{tpu_custom_call.1} parent=5 // pred_fallthru
        _
    $region6: #{tpu_custom_call.1} parent=1 // loop_footer
      %s21 = sadd.s32 1, %s17
    $region7: #{tpu_custom_call.1} parent=1 // loop_footer_branch
      %16 = sbr.rel target = $region3
    $region8: #{tpu_custom_call.1} parent=1 // loop_exit
      _
    %549 = vsyncpa [#allocation3], 1
    %s550 = scalar_lea.sflag [#allocation3], 1
    %551 = vsyncpa %s550, 1
    %552 = vsyncpa [#allocation4], 1
    %s553 = scalar_lea.sflag [#allocation4], 1
    %554 = vsyncpa %s553, 1

</llo_original>
